<compile_context>
chip_gen: v7x
topology: tpu7x:2x2x1
jax: 0.10.0
libtpu: 0.0.40
codegen_flags: <defaults>
</compile_context>

<pallas_src>
import functools

import jax
import jax.numpy as jnp
from jax.experimental import pallas as pl
from jax.experimental.pallas import tpu as pltpu


def _round_up(x: int, m: int) -> int:
    return ((x + m - 1) // m) * m


def _mlp_kernel(x_ref, w1_ref, b1_ref, w2_ref, b2_ref, out_ref):
    # Per-grid-step shapes (batch on the lane axis):
    #   x_ref:   (n_dim, tm)    grid coordinates, one row per input dimension
    #   w1_ref:  (hidden, n_dim)  == PyTorch fc[0].weight
    #   b1_ref:  (hidden, 1)      == fc[0].bias as a column
    #   w2_ref:  (hidden, 1)      == fc[1].weight transposed to a column
    #   b2_ref:  (1,) scalar in SMEM
    #   out_ref: (1, tm)        lane-dense output block
    n_dim = x_ref.shape[0]
    x = x_ref[...]            # (n_dim, tm)
    w1 = w1_ref[...]          # (hidden, n_dim)

    # Layer 1 as broadcast FMAs on the VPU: with K = n_dim (1 or 2) an MXU
    # matmul would leave the systolic array ~idle and force lane-sparse tiles.
    z = w1[:, 0:1] * x[0:1, :]                       # (hidden, tm)
    for d in range(1, n_dim):
        z = z + w1[:, d:d + 1] * x[d:d + 1, :]
    h = jnp.tanh(z + b1_ref[...])                    # full-lane tanh on the EUP

    # Layer 2 as VPU multiply + sublane reduction over hidden: an (tm,32)@(32,1)
    # matmul would produce 1 useful MXU column out of 128+.
    o = jnp.sum(w2_ref[...] * h, axis=0, keepdims=True)   # (1, tm)
    out_ref[...] = jnp.tanh(o + b2_ref[0]).astype(out_ref.dtype)


@functools.partial(jax.jit, static_argnames=("tm_max",))
def mlp_pallas_flat(x_t, w1, b1, w2, b2, *, tm_max=2048):
    """x_t: (n_dim, B) f32 -> (B,) f32. Batch rides on the lane axis."""
    n_dim, B = x_t.shape
    hidden = w1.shape[0]

    # Lane-dense batch tile: multiple of 128, as large as useful (<= tm_max).
    tm = min(_round_up(tm_max, 128), _round_up(B, 128))
    B_pad = _round_up(B, tm)
    if B_pad != B:
        x_t = jnp.pad(x_t, ((0, 0), (0, B_pad - B)))

    grid = (B_pad // tm,)
    out = pl.pallas_call(
        _mlp_kernel,
        out_shape=jax.ShapeDtypeStruct((1, B_pad), jnp.float32),
        grid_spec=pltpu.PrefetchScalarGridSpec(
            num_scalar_prefetch=0,
            grid=grid,
            in_specs=[
                pl.BlockSpec((n_dim, tm), lambda i: (0, i)),        # coords tile
                pl.BlockSpec((hidden, n_dim), lambda i: (0, 0)),    # W1 (whole)
                pl.BlockSpec((hidden, 1), lambda i: (0, 0)),        # b1 column
                pl.BlockSpec((hidden, 1), lambda i: (0, 0)),        # w2 column
                pl.BlockSpec(memory_space=pltpu.MemorySpace.SMEM),  # b2 scalar
            ],
            out_specs=pl.BlockSpec((1, tm), lambda i: (0, i)),      # lane-dense
        ),
        compiler_params=pltpu.CompilerParams(
            dimension_semantics=("parallel",),
        ),
    )(x_t, w1, b1, w2, b2)
    return out[0, :B]


def mlp_forward(xs, w1, b1, w2, b2, *, tm_max=2048):
    """Replicates MLP.forward (n_layers=2): list of 1-D arrays -> meshgrid ->
    [Linear + tanh] x 2 -> grid-shaped output.

    Parameters use the PyTorch nn.Linear layout:
      w1: (hidden, n_dim), b1: (hidden,), w2: (1, hidden), b2: (1,)
    """
    n_dim = len(xs)
    mesh = jnp.meshgrid(*xs, indexing="ij")
    out_shape = mesh[0].shape
    # TODO(synk): fuse the meshgrid into the kernel (rebuild coordinates from
    # program_id + iota per tile) to avoid this B*n_dim*4-byte HBM round trip.
    x_t = jnp.stack([m.reshape(-1) for m in mesh], axis=0).astype(jnp.float32)  # (n_dim, B)

    w1k = w1.astype(jnp.float32)                    # (hidden, n_dim)
    b1k = b1.reshape(-1, 1).astype(jnp.float32)     # (hidden, 1)
    w2k = w2.reshape(-1, 1).astype(jnp.float32)     # (hidden, 1)  == w2.T
    b2k = b2.reshape(-1).astype(jnp.float32)        # (1,)

    out_flat = mlp_pallas_flat(x_t, w1k, b1k, w2k, b2k, tm_max=tm_max)  # (B,)
    return out_flat.reshape(out_shape)


def init_params(key, n_dim, hidden_dim):
    """Deterministic params in the PyTorch nn.Linear layout."""
    k1, k2, k3, k4 = jax.random.split(key, 4)
    bound1 = 1.0 / jnp.sqrt(n_dim)
    bound2 = 1.0 / jnp.sqrt(hidden_dim)
    w1 = jax.random.uniform(k1, (hidden_dim, n_dim), jnp.float32, -bound1, bound1)
    b1 = jax.random.uniform(k2, (hidden_dim,), jnp.float32, -bound1, bound1)
    w2 = jax.random.uniform(k3, (1, hidden_dim), jnp.float32, -bound2, bound2)
    b2 = jax.random.uniform(k4, (1,), jnp.float32, -bound2, bound2)
    return w1, b1, w2, b2


if __name__ == "__main__":
    key = jax.random.PRNGKey(0)
    kx1, kx2, kp1, kx3, kp2 = jax.random.split(key, 5)
    hidden_dim = 32

    # --- n_dim = 2: (32,) x (16,) grid -> output (32, 16) ---
    n_dim = 2
    x1 = jax.random.uniform(kx1, (32,), jnp.float32, -1.0, 1.0)
    x2 = jax.random.uniform(kx2, (16,), jnp.float32, -1.0, 1.0)
    w1, b1, w2, b2 = init_params(kp1, n_dim, hidden_dim)

    out = mlp_forward([x1, x2], w1, b1, w2, b2)
    out = jax.block_until_ready(out)

    mesh = jnp.stack(jnp.meshgrid(x1, x2, indexing="ij"), axis=-1).reshape(-1, n_dim)
    h_ref = jnp.tanh(mesh @ w1.T + b1)
    ref = jnp.tanh(h_ref @ w2.T + b2).reshape(32, 16)
    assert out.shape == (32, 16), out.shape
    assert jnp.allclose(out, ref, atol=1e-5, rtol=1e-5)

    # --- n_dim = 1: (16,) grid -> output (16,) ---
    x3 = jax.random.uniform(kx3, (16,), jnp.float32, -1.0, 1.0)
    w1b, b1b, w2b, b2b = init_params(kp2, 1, hidden_dim)
    out1 = jax.block_until_ready(mlp_forward([x3], w1b, b1b, w2b, b2b))
    h1 = jnp.tanh(x3[:, None] @ w1b.T + b1b)
    ref1 = jnp.tanh(h1 @ w2b.T + b2b).reshape(16)
    assert out1.shape == (16,), out1.shape
    assert jnp.allclose(out1, ref1, atol=1e-5, rtol=1e-5)

    print("KERNEL_OK")
</pallas_src>

<mosaic_0001>
module attributes {stable_mosaic.version = 11 : i64} {
  func.func @_mlp_kernel(%arg0: i32, %arg1: memref<2x512xf32, #tpu.memory_space<vmem>>, %arg2: memref<32x2xf32, #tpu.memory_space<vmem>>, %arg3: memref<32x1xf32, #tpu.memory_space<vmem>>, %arg4: memref<32x1xf32, #tpu.memory_space<vmem>>, %arg5: memref<1xf32, #tpu.memory_space<smem>>, %arg6: memref<1x512xf32, #tpu.memory_space<vmem>>) attributes {dimension_semantics = [#tpu.dimension_semantics<parallel>], iteration_bounds = array<i64: 1>, scalar_prefetch = 0 : i64, scratch_operands = 0 : i64, tpu.core_type = #tpu.core_type<tc>, window_params = [{transform_indices = @transform_0, window_bounds = array<i64: 2, 512>}, {pipeline_mode = #tpu.pipeline_mode<synchronous>, transform_indices = @transform_1, window_bounds = array<i64: 32, 2>}, {pipeline_mode = #tpu.pipeline_mode<synchronous>, transform_indices = @transform_2, window_bounds = array<i64: 32, 1>}, {pipeline_mode = #tpu.pipeline_mode<synchronous>, transform_indices = @transform_3, window_bounds = array<i64: 32, 1>}, {transform_indices = @transform_4, window_bounds = array<i64: 1>}, {transform_indices = @transform_5, window_bounds = array<i64: 1, 512>}]} {
    %c0 = arith.constant 0 : index
    %c0_0 = arith.constant 0 : index
    %0 = vector.load %arg1[%c0, %c0_0] : memref<2x512xf32, #tpu.memory_space<vmem>>, vector<2x512xf32>
    %c0_1 = arith.constant 0 : index
    %c0_2 = arith.constant 0 : index
    %1 = vector.load %arg2[%c0_1, %c0_2] : memref<32x2xf32, #tpu.memory_space<vmem>>, vector<32x2xf32>
    %2 = vector.extract_strided_slice %1 {offsets = [0, 0], sizes = [32, 1], strides = [1, 1]} : vector<32x2xf32> to vector<32x1xf32>
    %3 = vector.extract_strided_slice %0 {offsets = [0, 0], sizes = [1, 512], strides = [1, 1]} : vector<2x512xf32> to vector<1x512xf32>
    %4 = vector.broadcast %2 : vector<32x1xf32> to vector<32x512xf32>
    %5 = vector.broadcast %3 : vector<1x512xf32> to vector<32x512xf32>
    %6 = arith.mulf %4, %5 : vector<32x512xf32>
    %7 = vector.extract_strided_slice %1 {offsets = [0, 1], sizes = [32, 1], strides = [1, 1]} : vector<32x2xf32> to vector<32x1xf32>
    %8 = vector.extract_strided_slice %0 {offsets = [1, 0], sizes = [1, 512], strides = [1, 1]} : vector<2x512xf32> to vector<1x512xf32>
    %9 = vector.broadcast %7 : vector<32x1xf32> to vector<32x512xf32>
    %10 = vector.broadcast %8 : vector<1x512xf32> to vector<32x512xf32>
    %11 = arith.mulf %9, %10 : vector<32x512xf32>
    %12 = arith.addf %6, %11 : vector<32x512xf32>
    %c0_3 = arith.constant 0 : index
    %c0_4 = arith.constant 0 : index
    %13 = vector.load %arg3[%c0_3, %c0_4] : memref<32x1xf32, #tpu.memory_space<vmem>>, vector<32x1xf32>
    %14 = vector.broadcast %13 : vector<32x1xf32> to vector<32x512xf32>
    %15 = arith.addf %12, %14 : vector<32x512xf32>
    %16 = math.tanh %15 : vector<32x512xf32>
    %c0_5 = arith.constant 0 : index
    %c0_6 = arith.constant 0 : index
    %17 = vector.load %arg4[%c0_5, %c0_6] : memref<32x1xf32, #tpu.memory_space<vmem>>, vector<32x1xf32>
    %18 = vector.broadcast %17 : vector<32x1xf32> to vector<32x512xf32>
    %19 = arith.mulf %18, %16 : vector<32x512xf32>
    %cst = arith.constant dense<0.000000e+00> : vector<512xf32>
    %20 = vector.multi_reduction <add>, %19, %cst [0] : vector<32x512xf32> to vector<512xf32>
    %21 = vector.shape_cast %20 : vector<512xf32> to vector<1x512xf32>
    %c0_7 = arith.constant 0 : index
    %22 = memref.load %arg5[%c0_7] : memref<1xf32, #tpu.memory_space<smem>>
    %23 = vector.broadcast %22 : f32 to vector<1x512xf32>
    %24 = arith.addf %21, %23 : vector<1x512xf32>
    %25 = math.tanh %24 : vector<1x512xf32>
    %c0_8 = arith.constant 0 : index
    %c0_9 = arith.constant 0 : index
    %26 = vector.load %arg6[%c0_8, %c0_9] : memref<1x512xf32, #tpu.memory_space<vmem>>, vector<1x512xf32>
    tpu.vector_store %arg6[%c0_8, %c0_9], %25 {strides = array<i32>} : memref<1x512xf32, #tpu.memory_space<vmem>>, vector<1x512xf32>,
    return
  }
  func.func @transform_0(%arg0: i32) -> (i32, i32) {
    %c0_i32 = arith.constant 0 : i32
    %c0_i32_0 = arith.constant 0 : i32
    return %c0_i32, %arg0 : i32, i32
  }
  func.func @transform_1(%arg0: i32) -> (i32, i32) {
    %c0_i32 = arith.constant 0 : i32
    %c0_i32_0 = arith.constant 0 : i32
    %c0_i32_1 = arith.constant 0 : i32
    return %c0_i32, %c0_i32_0 : i32, i32
  }
  func.func @transform_2(%arg0: i32) -> (i32, i32) {
    %c0_i32 = arith.constant 0 : i32
    %c0_i32_0 = arith.constant 0 : i32
    %c0_i32_1 = arith.constant 0 : i32
    return %c0_i32, %c0_i32_0 : i32, i32
  }
  func.func @transform_3(%arg0: i32) -> (i32, i32) {
    %c0_i32 = arith.constant 0 : i32
    %c0_i32_0 = arith.constant 0 : i32
    %c0_i32_1 = arith.constant 0 : i32
    return %c0_i32, %c0_i32_0 : i32, i32
  }
  func.func @transform_4(%arg0: i32) -> i32 {
    %c0_i32 = arith.constant 0 : i32
    %c0_i32_0 = arith.constant 0 : i32
    return %c0_i32 : i32
  }
  func.func @transform_5(%arg0: i32) -> (i32, i32) {
    %c0_i32 = arith.constant 0 : i32
    %c0_i32_0 = arith.constant 0 : i32
    return %c0_i32, %arg0 : i32, i32
  }
}

</mosaic_0001>

<llo_original>
// kernel: mlp_pallas_flat.1
$region0: #{mlp_pallas_flat.1}
  #allocation0 [shape = 'u32[]', space=smem, size = 0x4, offset = 0x4, fixed_abs, tag = 'smem constant byte address 0x4 - core index']
  #allocation1 [shape = 'u32[144,128]{1,0:T(1,128)}', space=vmem, size = 0x12000, scoped, tag = 'internal scratch']
  #allocation2 [shape = 'f32[1]{0:T(128)S(6)}', space=smem, size = 0x200, scoped, tag = 'scoped memory for mlp_pallas_flat.1']
  %s0 = inlined_call_operand.vmem [shape: f32[2,512], index: 0, kind: input, shape index: {}]
  %s1 = inlined_call_operand.vmem [shape: f32[32,2], index: 1, kind: input, shape index: {}]
  %s2 = inlined_call_operand.vmem [shape: f32[32,1], index: 2, kind: input, shape index: {}]
  %s3 = inlined_call_operand.vmem [shape: f32[32,1], index: 3, kind: input, shape index: {}]
  %s4 = inlined_call_operand.<no memory space> [shape: f32[1], index: 4, kind: input, shape index: {}]
  %s5 = inlined_call_operand.hbm [shape: f32[1,512], index: 5, kind: output, shape index: {}]
  %s6 = sld [smem:[#allocation0]]
  $region30: #{mlp_pallas_flat.1} parent=0
    _
  %s8 = ssub.s32 1, %s6
  %s9 = scalar_select 0, %s8, %s6
  %10 = sst [smem:[#allocation2]] %s4
  $region1: #{mlp_pallas_flat.1} parent=0
    #allocation3 [shape = 'u8[2048]{0}', space=vmem, size = 0x800, scoped, tag = 'output window, operand 0, single buffered']
    #allocation4 [shape = 's32[1]{0}', space=sflag, size = 0x4, scoped, tag = 'scoped memory for mlp_pallas_flat.1']
    %11 = vsyncpa [#allocation4], 0
    // Predicated region
    $region2: #{mlp_pallas_flat.1} parent=1 // pred_check
      _
    $region3: #{mlp_pallas_flat.1} parent=1 // pred_check_branch
      %13 = sbr.rel (0) target = $region5
    $region4: #{mlp_pallas_flat.1} parent=1 // pred_region
      _
    $region5: #{mlp_pallas_flat.1} parent=1 // pred_fallthru
      _
    // Predicated region
    $region6: #{mlp_pallas_flat.1} parent=1 // pred_check
      _
    $region7: #{mlp_pallas_flat.1} parent=1 // pred_check_branch
      %15 = sbr.rel (0) target = $region9
    $region8: #{mlp_pallas_flat.1} parent=1 // pred_region
      _
    $region9: #{mlp_pallas_flat.1} parent=1 // pred_fallthru
      _
    // Predicated region
    $region10: #{mlp_pallas_flat.1} parent=1 // pred_check
      _
    $region11: #{mlp_pallas_flat.1} parent=1 // pred_check_branch
      %17 = sbr.rel (0) target = $region13
    $region12: #{mlp_pallas_flat.1} parent=1 // pred_region
      _
    $region13: #{mlp_pallas_flat.1} parent=1 // pred_fallthru
      _
    // Predicated region
    $region14: #{mlp_pallas_flat.1} parent=1 // pred_check
      _
    $region15: #{mlp_pallas_flat.1} parent=1 // pred_check_branch
      %19 = sbr.rel (0) target = $region17
    $region16: #{mlp_pallas_flat.1} parent=1 // pred_region
      _
    $region17: #{mlp_pallas_flat.1} parent=1 // pred_fallthru
      _
    // Predicated region
    $region18: #{mlp_pallas_flat.1} parent=1 // pred_check
      _
    $region19: #{mlp_pallas_flat.1} parent=1 // pred_check_branch
      %21 = sbr.rel (0) target = $region21
    $region20: #{mlp_pallas_flat.1} parent=1 // pred_region
      _
    $region21: #{mlp_pallas_flat.1} parent=1 // pred_fallthru
      _
    %v22 = vld [vmem:[%s0] sm:$0xff]
    %v23 = vld [vmem:[%s1] sm:$0xff]
    %v24 = vld [vmem:[%s1 + $0x8] sm:$0xff]
    %v25 = vld [vmem:[%s1 + $0x10] sm:$0xff]
    %v26 = vld [vmem:[%s1 + $0x18] sm:$0xff]
    %28 = vset.pattern.permute.xlu0 0
    %29 = vperm.xlu0 %28, %v23
    %v30 = vpop.permute.xlu0 %29
    %33 = vset.pattern.permute.xlu0 0
    %34 = vperm.xlu0 %33, %v24
    %v35 = vpop.permute.xlu0 %34
    %38 = vset.pattern.permute.xlu0 0
    %39 = vperm.xlu0 %38, %v25
    %v40 = vpop.permute.xlu0 %39
    %43 = vset.pattern.permute.xlu0 0
    %44 = vperm.xlu0 %43, %v26
    %v45 = vpop.permute.xlu0 %44
    %v48 = vlaneseq
    %v49 = vshrl.u32 %v48, 7
    %v50 = vsub.s32 0, %v49
    %v51 = vrot.slane %v22, %v50
    %v52 = vlaneseq
    %v53 = vshrl.u32 %v52, 7
    %v54 = vsub.s32 2, %v53
    %v55 = vrot.slane %v22, %v54
    %v56 = vlaneseq
    %v57 = vshrl.u32 %v56, 7
    %v58 = vsub.s32 4, %v57
    %v59 = vrot.slane %v22, %v58
    %v60 = vlaneseq
    %v61 = vshrl.u32 %v60, 7
    %v62 = vsub.s32 6, %v61
    %v63 = vrot.slane %v22, %v62
    %v68 = vlaneseq
    %v69 = vshrl.u32 %v68, 7
    %v70 = vsub.s32 0, %v69
    %v71 = vrot.slane %v51, %v70
    %v72 = vlaneseq
    %v73 = vshrl.u32 %v72, 7
    %v74 = vsub.s32 0, %v73
    %v75 = vrot.slane %v55, %v74
    %v76 = vlaneseq
    %v77 = vshrl.u32 %v76, 7
    %v78 = vsub.s32 0, %v77
    %v79 = vrot.slane %v59, %v78
    %v80 = vlaneseq
    %v81 = vshrl.u32 %v80, 7
    %v82 = vsub.s32 0, %v81
    %v83 = vrot.slane %v63, %v82
    %v84 = vmul.f32 %v30, %v71
    %v85 = vmul.f32 %v30, %v75
    %v86 = vmul.f32 %v30, %v79
    %v87 = vmul.f32 %v30, %v83
    %v88 = vmul.f32 %v35, %v71
    %v89 = vmul.f32 %v35, %v75
    %v90 = vmul.f32 %v35, %v79
    %v91 = vmul.f32 %v35, %v83
    %v92 = vmul.f32 %v40, %v71
    %v93 = vmul.f32 %v40, %v75
    %v94 = vmul.f32 %v40, %v79
    %v95 = vmul.f32 %v40, %v83
    %v96 = vmul.f32 %v45, %v71
    %v97 = vmul.f32 %v45, %v75
    %v98 = vmul.f32 %v45, %v79
    %v99 = vmul.f32 %v45, %v83
    %100 = vset.pattern.permute.xlu0 1
    %101 = vperm.xlu0 %100, %v23
    %v102 = vpop.permute.xlu0 %101
    %104 = vset.pattern.permute.xlu0 1
    %105 = vperm.xlu0 %104, %v24
    %v106 = vpop.permute.xlu0 %105
    %108 = vset.pattern.permute.xlu0 1
    %109 = vperm.xlu0 %108, %v25
    %v110 = vpop.permute.xlu0 %109
    %112 = vset.pattern.permute.xlu0 1
    %113 = vperm.xlu0 %112, %v26
    %v114 = vpop.permute.xlu0 %113
    %v116 = vlaneseq
    %v117 = vshrl.u32 %v116, 7
    %v118 = vsub.s32 1, %v117
    %v119 = vrot.slane %v22, %v118
    %v120 = vlaneseq
    %v121 = vshrl.u32 %v120, 7
    %v122 = vsub.s32 3, %v121
    %v123 = vrot.slane %v22, %v122
    %v124 = vlaneseq
    %v125 = vshrl.u32 %v124, 7
    %v126 = vsub.s32 5, %v125
    %v127 = vrot.slane %v22, %v126
    %v128 = vlaneseq
    %v129 = vshrl.u32 %v128, 7
    %v130 = vsub.s32 7, %v129
    %v131 = vrot.slane %v22, %v130
    %v136 = vlaneseq
    %v137 = vshrl.u32 %v136, 7
    %v138 = vsub.s32 1, %v137
    %v139 = vrot.slane %v119, %v138
    %v140 = vlaneseq
    %v141 = vshrl.u32 %v140, 7
    %v142 = vsub.s32 1, %v141
    %v143 = vrot.slane %v123, %v142
    %v144 = vlaneseq
    %v145 = vshrl.u32 %v144, 7
    %v146 = vsub.s32 1, %v145
    %v147 = vrot.slane %v127, %v146
    %v148 = vlaneseq
    %v149 = vshrl.u32 %v148, 7
    %v150 = vsub.s32 1, %v149
    %v151 = vrot.slane %v131, %v150
    %v152 = vmul.f32 %v102, %v139
    %v153 = vmul.f32 %v102, %v143
    %v154 = vmul.f32 %v102, %v147
    %v155 = vmul.f32 %v102, %v151
    %v156 = vmul.f32 %v106, %v139
    %v157 = vmul.f32 %v106, %v143
    %v158 = vmul.f32 %v106, %v147
    %v159 = vmul.f32 %v106, %v151
    %v160 = vmul.f32 %v110, %v139
    %v161 = vmul.f32 %v110, %v143
    %v162 = vmul.f32 %v110, %v147
    %v163 = vmul.f32 %v110, %v151
    %v164 = vmul.f32 %v114, %v139
    %v165 = vmul.f32 %v114, %v143
    %v166 = vmul.f32 %v114, %v147
    %v167 = vmul.f32 %v114, %v151
    %v168 = vadd.f32 %v84, %v152
    %v169 = vadd.f32 %v85, %v153
    %v170 = vadd.f32 %v86, %v154
    %v171 = vadd.f32 %v87, %v155
    %v172 = vadd.f32 %v88, %v156
    %v173 = vadd.f32 %v89, %v157
    %v174 = vadd.f32 %v90, %v158
    %v175 = vadd.f32 %v91, %v159
    %v176 = vadd.f32 %v92, %v160
    %v177 = vadd.f32 %v93, %v161
    %v178 = vadd.f32 %v94, %v162
    %v179 = vadd.f32 %v95, %v163
    %v180 = vadd.f32 %v96, %v164
    %v181 = vadd.f32 %v97, %v165
    %v182 = vadd.f32 %v98, %v166
    %v183 = vadd.f32 %v99, %v167
    %v184 = vld [vmem:[%s2] sm:$0xff]
    %v185 = vld [vmem:[%s2 + $0x8] sm:$0xff]
    %v186 = vld [vmem:[%s2 + $0x10] sm:$0xff]
    %v187 = vld [vmem:[%s2 + $0x18] sm:$0xff]
    %189 = vset.pattern.permute.xlu0 0
    %190 = vperm.xlu0 %189, %v184
    %v191 = vpop.permute.xlu0 %190
    %194 = vset.pattern.permute.xlu0 0
    %195 = vperm.xlu0 %194, %v185
    %v196 = vpop.permute.xlu0 %195
    %199 = vset.pattern.permute.xlu0 0
    %200 = vperm.xlu0 %199, %v186
    %v201 = vpop.permute.xlu0 %200
    %204 = vset.pattern.permute.xlu0 0
    %205 = vperm.xlu0 %204, %v187
    %v206 = vpop.permute.xlu0 %205
    %v208 = vadd.f32 %v168, %v191
    %v209 = vadd.f32 %v169, %v191
    %v210 = vadd.f32 %v170, %v191
    %v211 = vadd.f32 %v171, %v191
    %v212 = vadd.f32 %v172, %v196
    %v213 = vadd.f32 %v173, %v196
    %v214 = vadd.f32 %v174, %v196
    %v215 = vadd.f32 %v175, %v196
    %v216 = vadd.f32 %v176, %v201
    %v217 = vadd.f32 %v177, %v201
    %v218 = vadd.f32 %v178, %v201
    %v219 = vadd.f32 %v179, %v201
    %v220 = vadd.f32 %v180, %v206
    %v221 = vadd.f32 %v181, %v206
    %v222 = vadd.f32 %v182, %v206
    %v223 = vadd.f32 %v183, %v206
    %v224 = vtanh.pop %v208
    %v225 = vtanh.pop %v209
    %v226 = vtanh.pop %v210
    %v227 = vtanh.pop %v211
    %v228 = vtanh.pop %v212
    %v229 = vtanh.pop %v213
    %v230 = vtanh.pop %v214
    %v231 = vtanh.pop %v215
    %v232 = vtanh.pop %v216
    %v233 = vtanh.pop %v217
    %v234 = vtanh.pop %v218
    %v235 = vtanh.pop %v219
    %v236 = vtanh.pop %v220
    %v237 = vtanh.pop %v221
    %v238 = vtanh.pop %v222
    %v239 = vtanh.pop %v223
    %v240 = vld [vmem:[%s3] sm:$0xff]
    %v241 = vld [vmem:[%s3 + $0x8] sm:$0xff]
    %v242 = vld [vmem:[%s3 + $0x10] sm:$0xff]
    %v243 = vld [vmem:[%s3 + $0x18] sm:$0xff]
    %245 = vset.pattern.permute.xlu0 0
    %246 = vperm.xlu0 %245, %v240
    %v247 = vpop.permute.xlu0 %246
    %250 = vset.pattern.permute.xlu0 0
    %251 = vperm.xlu0 %250, %v241
    %v252 = vpop.permute.xlu0 %251
    %255 = vset.pattern.permute.xlu0 0
    %256 = vperm.xlu0 %255, %v242
    %v257 = vpop.permute.xlu0 %256
    %260 = vset.pattern.permute.xlu0 0
    %261 = vperm.xlu0 %260, %v243
    %v262 = vpop.permute.xlu0 %261
    %v264 = vmul.f32 %v247, %v224
    %v265 = vmul.f32 %v247, %v225
    %v266 = vmul.f32 %v247, %v226
    %v267 = vmul.f32 %v247, %v227
    %v268 = vmul.f32 %v252, %v228
    %v269 = vmul.f32 %v252, %v229
    %v270 = vmul.f32 %v252, %v230
    %v271 = vmul.f32 %v252, %v231
    %v272 = vmul.f32 %v257, %v232
    %v273 = vmul.f32 %v257, %v233
    %v274 = vmul.f32 %v257, %v234
    %v275 = vmul.f32 %v257, %v235
    %v276 = vmul.f32 %v262, %v236
    %v277 = vmul.f32 %v262, %v237
    %v278 = vmul.f32 %v262, %v238
    %v279 = vmul.f32 %v262, %v239
    %v280 = vadd.f32 %v264, %v268
    %v281 = vadd.f32 %v280, %v272
    %v282 = vadd.f32 %v281, %v276
    %v283 = vrot.slane %v282, 4
    %v284 = vadd.f32 %v282, %v283
    %v285 = vrot.slane %v284, 2
    %v286 = vadd.f32 %v284, %v285
    %v287 = vrot.slane %v286, 1
    %v288 = vadd.f32 %v286, %v287
    %v289 = vadd.f32 %v265, %v269
    %v290 = vadd.f32 %v289, %v273
    %v291 = vadd.f32 %v290, %v277
    %v292 = vrot.slane %v291, 4
    %v293 = vadd.f32 %v291, %v292
    %v294 = vrot.slane %v293, 2
    %v295 = vadd.f32 %v293, %v294
    %v296 = vrot.slane %v295, 1
    %v297 = vadd.f32 %v295, %v296
    %v298 = vadd.f32 %v266, %v270
    %v299 = vadd.f32 %v298, %v274
    %v300 = vadd.f32 %v299, %v278
    %v301 = vrot.slane %v300, 4
    %v302 = vadd.f32 %v300, %v301
    %v303 = vrot.slane %v302, 2
    %v304 = vadd.f32 %v302, %v303
    %v305 = vrot.slane %v304, 1
    %v306 = vadd.f32 %v304, %v305
    %v307 = vadd.f32 %v267, %v271
    %v308 = vadd.f32 %v307, %v275
    %v309 = vadd.f32 %v308, %v279
    %v310 = vrot.slane %v309, 4
    %v311 = vadd.f32 %v309, %v310
    %v312 = vrot.slane %v311, 2
    %v313 = vadd.f32 %v311, %v312
    %v314 = vrot.slane %v313, 1
    %v315 = vadd.f32 %v313, %v314
    %s316 = sld [smem:[#allocation2]]
    %v317 = vstv %s316
    %v318 = vadd.f32 %v288, %v317
    %v319 = vadd.f32 %v297, %v317
    %v320 = vadd.f32 %v306, %v317
    %v321 = vadd.f32 %v315, %v317
    %v322 = vtanh.pop %v318
    %v323 = vtanh.pop %v319
    %v324 = vtanh.pop %v320
    %v325 = vtanh.pop %v321
    %v330 = vcombine.low %v322, %v323
    %v331 = vcombine.low %v324, %v325
    %v333 = vunpack.c.l.s4 1966171168
    %v334 = vunpack.c.0.s8 %v333
    %v335 = vlaneseq
    %v336 = vshrl.u32 %v335, 7
    %v337 = vsub.s32 %v334, %v336
    %v338 = vrot.slane %v330, %v337
    %v340 = vunpack.c.l.s4 1966171168
    %v341 = vunpack.c.0.s8 %v340
    %v342 = vlaneseq
    %v343 = vshrl.u32 %v342, 7
    %v344 = vsub.s32 %v341, %v343
    %v345 = vrot.slane %v331, %v344
    %v346 = vcombine.low %v338, %v345
    %v348 = vunpack.c.l.s4 1966171168
    %v349 = vunpack.c.0.s8 %v348
    %v350 = vlaneseq
    %v351 = vshrl.u32 %v350, 7
    %v352 = vsub.s32 %v349, %v351
    %v353 = vrot.slane %v346, %v352
    %v355 = vlaneseq
    %vm356 = vcmp.ge.s32.totalorder %v355, 0
    %vm357 = vcmp.lt.s32.totalorder %v355, 512
    %vm358 = vmand %vm356, %vm357
    %359 = vst.msk [vmem:[#allocation3] sm:$0xf] %vm358, %v353
    // Predicated region
    $region22: #{mlp_pallas_flat.1} parent=1 // pred_check
      _
    $region23: #{mlp_pallas_flat.1} parent=1 // pred_check_branch
      %361 = sbr.rel (0) target = $region25
    $region24: #{mlp_pallas_flat.1} parent=1 // pred_region
      %s363 = ssub.s32 64, 64
      %364 = vsyncadd [#allocation4], %s363
      %s366 = sshll.u32 [#allocation3], 4
      %s367 = int_to_ptr.vmem [resolvable:$true] %s366
      %369 = dma.vmem_to_hbm [thread:$0]  %s367, 64, %s5, [#allocation4]
    $region25: #{mlp_pallas_flat.1} parent=1 // pred_fallthru
      _
    // Predicated region
    $region26: #{mlp_pallas_flat.1} parent=1 // pred_check
      _
    $region27: #{mlp_pallas_flat.1} parent=1 // pred_check_branch
      %371 = sbr.rel (0) target = $region29
    $region28: #{mlp_pallas_flat.1} parent=1 // pred_region
      %372 = dma.done [#allocation4], 64
    $region29: #{mlp_pallas_flat.1} parent=1 // pred_fallthru
      _
    %373 = vsyncpa [#allocation4], 1

</llo_original>
